<compile_context>
chip_gen: v6e
topology: v6e:2x2x1
jax: 0.10.0
libtpu: 0.0.40
codegen_flags: <defaults>
</compile_context>

<pallas_src>
import jax
import jax.numpy as jnp
from jax.experimental import pallas as pl
from jax.experimental.pallas import tpu as pltpu

block_size = 64   # max context length (causal mask size)
n_embd = 384

# VMEM-aware cap on batches per grid step: double-buffered bf16 x blocks
# (~48 KiB/batch x 2) + live f32 intermediates (qkv/wei/p/out, ~150 KiB/batch)
# => 32 batches ~= 8 MiB, comfortably inside v5e's 16 MiB scoped default and
# v7x's 64 MiB physical VMEM.
_MAX_BATCH_BLOCK = 32

# Finite "-inf": exp underflows to exactly 0 after max-subtraction, and a
# fully-masked row can never produce (-inf) - (-inf) = NaN.
_MASK_VALUE = -1e30


def _head_kernel(x_ref, w_qkv_ref, o_ref):
    # x_ref: (Bblk, T, C) bf16   w_qkv_ref: (C, 3H) bf16   o_ref: (Bblk, T, H)
    Bblk, T, C = x_ref.shape
    H = o_ref.shape[-1]

    # Fused q/k/v projection: one (Bblk*T, C) @ (C, 3H) bf16 MXU matmul with
    # f32 accumulation (projections are ~90% of kernel FLOPs).
    x2 = x_ref[...].reshape(Bblk * T, C)          # leading-dim collapse: free
    qkv = jnp.dot(x2, w_qkv_ref[...], preferred_element_type=jnp.float32)
    qkv = qkv.reshape(Bblk, T, 3 * H)
    q = qkv[:, :, 0 * H:1 * H]                    # (Bblk, T, H), f32
    k = qkv[:, :, 1 * H:2 * H]
    v = qkv[:, :, 2 * H:3 * H]
    # NOTE: slices at lane offsets 0/64/128 of the 192-lane qkv may insert a
    # relayout copy; minor (XLU has slack under the MXU) and only removable via
    # multi-head fusion — verify in the bundle dump before spending effort.

    # Attention scores: batched NT matmul, bf16 operands, f32 accumulation.
    # The module's C**-0.5 scale is already folded into w_query in the wrapper.
    wei = jax.lax.dot_general(
        q.astype(jnp.bfloat16), k.astype(jnp.bfloat16),
        dimension_numbers=(((2,), (2,)), ((0,), (0,))),
        preferred_element_type=jnp.float32,
    )                                             # (Bblk, T, T)

    # Causal (lower-triangular) mask — built once, broadcast over the batch block.
    row = jax.lax.broadcasted_iota(jnp.int32, (T, T), 0)
    col = jax.lax.broadcasted_iota(jnp.int32, (T, T), 1)
    wei = jnp.where((row >= col)[None, :, :], wei, _MASK_VALUE)

    # Numerically stable softmax, entirely in f32, exact divide.
    wei = wei - jnp.max(wei, axis=-1, keepdims=True)
    p = jnp.exp(wei)
    p = p / jnp.sum(p, axis=-1, keepdims=True)

    # Weighted aggregation of values: (Bblk,T,T) x (Bblk,T,H) -> (Bblk,T,H),
    # bf16 operands, f32 accumulation, written as one contiguous slab.
    out = jax.lax.dot_general(
        p.astype(jnp.bfloat16), v.astype(jnp.bfloat16),
        dimension_numbers=(((2,), (1,)), ((0,), (0,))),
        preferred_element_type=jnp.float32,
    )
    o_ref[...] = out.astype(o_ref.dtype)


def _default_batch_block(B, T):
    """Generation-aware batch block.

    * MXU fill: a single-TC (v5e/v6e) grid is a serial loop, so small batches
      run as ONE step with M = B*T rows instead of being split.
    * VMEM: cap at _MAX_BATCH_BLOCK so double-buffered x + f32 intermediates
      fit the scoped limit on all generations (v5e 16 MiB default scoped,
      v7x 64 MiB physical).
    * Large B (>= 128) therefore still gets >= 4 grid steps, keeping the x DMA
      pipelined behind compute and leaving a parallel axis for v7x's two TCs.
    """
    cap = max(1, min(B, _MAX_BATCH_BLOCK))
    for bb in range(cap, 0, -1):          # largest divisor of B that is <= cap
        if B % bb == 0:
            return bb
    return 1


def head_forward(x, w_key, w_query, w_value, *, batch_block=None):
    """x: (B, T, C); w_*: (C, head_size) (transpose of nn.Linear.weight).

    Returns (B, T, head_size) in x.dtype — eval-mode forward of `Head`.
    """
    B, T, C = x.shape
    H = w_key.shape[1]
    assert T <= block_size, "sequence length exceeds block_size"

    # Fold the module's C**-0.5 score scale into the query weights (a tiny
    # one-time op XLA constant-folds), then fuse q|k|v into one (C, 3H) matrix.
    w_qkv = jnp.concatenate([w_query * (C ** -0.5), w_key, w_value], axis=1)

    # bf16 MXU operands (f32 accumulation happens in-kernel): native MXU dtype
    # on v5e/v6e/v7x and half the HBM bytes for the streamed x.
    x_bf = x.astype(jnp.bfloat16)
    w_qkv = w_qkv.astype(jnp.bfloat16)

    if batch_block is None:
        batch_block = _default_batch_block(B, T)
    assert B % batch_block == 0, "batch must be divisible by batch_block"
    grid = (B // batch_block,)

    return pl.pallas_call(
        _head_kernel,
        out_shape=jax.ShapeDtypeStruct((B, T, H), x.dtype),
        grid_spec=pltpu.PrefetchScalarGridSpec(
            num_scalar_prefetch=0,
            grid=grid,
            in_specs=[
                # TODO(synk): if a profile shows exposed x DMA at step
                # boundaries (now that bf16 shrank per-step compute), sweep
                # pipeline_mode=pl.Buffered(3) here (+1 x block of VMEM).
                pl.BlockSpec((batch_block, T, C), lambda b: (b, 0, 0)),
                pl.BlockSpec((C, 3 * H), lambda b: (0, 0)),
            ],
            out_specs=pl.BlockSpec((batch_block, T, H), lambda b: (b, 0, 0)),
        ),
        compiler_params=pltpu.CompilerParams(
            dimension_semantics=("parallel",),
            # Explicit scoped-VMEM budget with headroom on every generation
            # (v5e default is only 16 MiB; v7x physical VMEM is 64 MiB/TC).
            vmem_limit_bytes=32 * 1024 * 1024,
        ),
    )(x_bf, w_qkv)


def _reference(x, w_key, w_query, w_value):
    """Pure-JAX f32 reference mirroring the PyTorch forward (eval mode)."""
    B, T, C = x.shape
    k = x @ w_key
    q = x @ w_query
    v = x @ w_value
    wei = (q @ jnp.swapaxes(k, -2, -1)) * (C ** -0.5)
    tril = jnp.tril(jnp.ones((T, T), dtype=bool))
    wei = jnp.where(tril, wei, -jnp.inf)
    wei = jax.nn.softmax(wei, axis=-1)
    return wei @ v


if __name__ == "__main__":
    key = jax.random.PRNGKey(0)
    B, T, C = 2, block_size, n_embd     # (2, 64, 384)
    head_size = 64

    kx, kk, kq, kv = jax.random.split(key, 4)
    x = jax.random.normal(kx, (B, T, C), dtype=jnp.float32)

    # Deterministic "nn.Linear(bias=False)"-style weights, stored transposed (C, H).
    bound = 1.0 / (C ** 0.5)
    w_key   = jax.random.uniform(kk, (C, head_size), jnp.float32, -bound, bound)
    w_query = jax.random.uniform(kq, (C, head_size), jnp.float32, -bound, bound)
    w_value = jax.random.uniform(kv, (C, head_size), jnp.float32, -bound, bound)

    out = head_forward(x, w_key, w_query, w_value)
    out = jax.block_until_ready(out)

    ref = _reference(x, w_key, w_query, w_value)
    assert out.shape == (B, T, head_size)
    # Tolerance budget is set by the bf16 MXU operands (softmax itself is exact
    # f32): observed error is ~2-3e-3 for O(1) outputs; 1e-2 gives safe margin.
    assert jnp.allclose(out, ref, atol=1e-2, rtol=1e-2)

    print("KERNEL_OK")
</pallas_src>

<mosaic_0001>
module attributes {stable_mosaic.version = 11 : i64} {
  func.func @_head_kernel(%arg0: i32, %arg1: memref<2x64x384xbf16, #tpu.memory_space<vmem>>, %arg2: memref<384x192xbf16, #tpu.memory_space<vmem>>, %arg3: memref<2x64x64xf32, #tpu.memory_space<vmem>>) attributes {dimension_semantics = [#tpu.dimension_semantics<parallel>], iteration_bounds = array<i64: 1>, scalar_prefetch = 0 : i64, scratch_operands = 0 : i64, tpu.core_type = #tpu.core_type<tc>, window_params = [{transform_indices = @transform_0, window_bounds = array<i64: 2, 64, 384>}, {pipeline_mode = #tpu.pipeline_mode<synchronous>, transform_indices = @transform_1, window_bounds = array<i64: 384, 192>}, {transform_indices = @transform_2, window_bounds = array<i64: 2, 64, 64>}]} {
    %c0 = arith.constant 0 : index
    %c0_0 = arith.constant 0 : index
    %c0_1 = arith.constant 0 : index
    %0 = vector.load %arg1[%c0, %c0_0, %c0_1] : memref<2x64x384xbf16, #tpu.memory_space<vmem>>, vector<2x64x384xbf16>
    %1 = vector.shape_cast %0 : vector<2x64x384xbf16> to vector<128x384xbf16>
    %c0_2 = arith.constant 0 : index
    %c0_3 = arith.constant 0 : index
    %2 = vector.load %arg2[%c0_2, %c0_3] : memref<384x192xbf16, #tpu.memory_space<vmem>>, vector<384x192xbf16>
    %cst = arith.constant dense<0.000000e+00> : vector<128x192xf32>
    %3 = tpu.matmul %1, %2, %cst {dimension_numbers = #tpu.dot_dimension_numbers<[1], [0], [0], [1], [0, 0, 1, 1], [], []>} : vector<128x384xbf16>, vector<384x192xbf16>, vector<128x192xf32> -> vector<128x192xf32>
    %4 = vector.shape_cast %3 : vector<128x192xf32> to vector<2x64x192xf32>
    %5 = vector.extract_strided_slice %4 {offsets = [0, 0, 0], sizes = [2, 64, 64], strides = [1, 1, 1]} : vector<2x64x192xf32> to vector<2x64x64xf32>
    %6 = vector.extract_strided_slice %4 {offsets = [0, 0, 64], sizes = [2, 64, 64], strides = [1, 1, 1]} : vector<2x64x192xf32> to vector<2x64x64xf32>
    %7 = vector.extract_strided_slice %4 {offsets = [0, 0, 128], sizes = [2, 64, 64], strides = [1, 1, 1]} : vector<2x64x192xf32> to vector<2x64x64xf32>
    %8 = arith.truncf %5 : vector<2x64x64xf32> to vector<2x64x64xbf16>
    %9 = arith.truncf %6 : vector<2x64x64xf32> to vector<2x64x64xbf16>
    %cst_4 = arith.constant dense<0.000000e+00> : vector<2x64x64xf32>
    %10 = tpu.matmul %8, %9, %cst_4 {dimension_numbers = #tpu.dot_dimension_numbers<[2], [2], [1], [1], [0, 0, 0, 1, 1, 1], [0], [0]>} : vector<2x64x64xbf16>, vector<2x64x64xbf16>, vector<2x64x64xf32> -> vector<2x64x64xf32>
    %11 = tpu.iota {dimensions = array<i32: 0>} : vector<64x64xi32>
    %12 = tpu.iota {dimensions = array<i32: 1>} : vector<64x64xi32>
    %13 = arith.cmpi sge, %11, %12 : vector<64x64xi32>
    %14 = vector.shape_cast %13 : vector<64x64xi1> to vector<1x64x64xi1>
    %cst_5 = arith.constant -1.000000e+30 : f32
    %15 = vector.shape_cast %14 : vector<1x64x64xi1> to vector<1x64x64xi1>
    %16 = vector.broadcast %15 : vector<1x64x64xi1> to vector<2x64x64xi1>
    %17 = vector.broadcast %cst_5 : f32 to vector<2x64x64xf32>
    %18 = arith.select %16, %10, %17 : vector<2x64x64xi1>, vector<2x64x64xf32>
    %cst_6 = arith.constant dense<0xFF800000> : vector<2x64xf32>
    %19 = vector.multi_reduction <maximumf>, %18, %cst_6 [2] : vector<2x64x64xf32> to vector<2x64xf32>
    %20 = vector.shape_cast %19 : vector<2x64xf32> to vector<2x64x1xf32>
    %21 = vector.broadcast %20 : vector<2x64x1xf32> to vector<2x64x64xf32>
    %22 = arith.subf %18, %21 : vector<2x64x64xf32>
    %23 = math.exp %22 : vector<2x64x64xf32>
    %cst_7 = arith.constant dense<0.000000e+00> : vector<2x64xf32>
    %24 = vector.multi_reduction <add>, %23, %cst_7 [2] : vector<2x64x64xf32> to vector<2x64xf32>
    %25 = vector.shape_cast %24 : vector<2x64xf32> to vector<2x64x1xf32>
    %26 = vector.broadcast %25 : vector<2x64x1xf32> to vector<2x64x64xf32>
    %27 = arith.divf %23, %26 : vector<2x64x64xf32>
    %28 = arith.truncf %27 : vector<2x64x64xf32> to vector<2x64x64xbf16>
    %29 = arith.truncf %7 : vector<2x64x64xf32> to vector<2x64x64xbf16>
    %cst_8 = arith.constant dense<0.000000e+00> : vector<2x64x64xf32>
    %30 = tpu.matmul %28, %29, %cst_8 {dimension_numbers = #tpu.dot_dimension_numbers<[2], [1], [1], [2], [0, 0, 0, 1, 1, 2], [0], [0]>} : vector<2x64x64xbf16>, vector<2x64x64xbf16>, vector<2x64x64xf32> -> vector<2x64x64xf32>
    %c0_9 = arith.constant 0 : index
    %c0_10 = arith.constant 0 : index
    %c0_11 = arith.constant 0 : index
    %31 = vector.load %arg3[%c0_9, %c0_10, %c0_11] : memref<2x64x64xf32, #tpu.memory_space<vmem>>, vector<2x64x64xf32>
    tpu.vector_store %arg3[%c0_9, %c0_10, %c0_11], %30 {strides = array<i32>} : memref<2x64x64xf32, #tpu.memory_space<vmem>>, vector<2x64x64xf32>,
    return
  }
  func.func @transform_0(%arg0: i32) -> (i32, i32, i32) {
    %c0_i32 = arith.constant 0 : i32
    %c0_i32_0 = arith.constant 0 : i32
    %c0_i32_1 = arith.constant 0 : i32
    return %arg0, %c0_i32, %c0_i32_0 : i32, i32, i32
  }
  func.func @transform_1(%arg0: i32) -> (i32, i32) {
    %c0_i32 = arith.constant 0 : i32
    %c0_i32_0 = arith.constant 0 : i32
    %c0_i32_1 = arith.constant 0 : i32
    return %c0_i32, %c0_i32_0 : i32, i32
  }
  func.func @transform_2(%arg0: i32) -> (i32, i32, i32) {
    %c0_i32 = arith.constant 0 : i32
    %c0_i32_0 = arith.constant 0 : i32
    %c0_i32_1 = arith.constant 0 : i32
    return %arg0, %c0_i32, %c0_i32_0 : i32, i32, i32
  }
}

</mosaic_0001>

<llo_original>
// kernel: tpu_custom_call.1
$region0: #{tpu_custom_call.1}
  #allocation0 [shape = 'u32[]', space=smem, size = 0x4, offset = 0x4, fixed_abs, tag = 'smem constant byte address 0x4 - core index']
  #allocation1 [shape = 'u32[144,128]{1,0:T(1,128)}', space=vmem, size = 0x12000, scoped, tag = 'internal scratch']
  %s0 = inlined_call_operand.vmem [shape: bf16[2,64,384], index: 0, kind: input, shape index: {}]
  %s1 = inlined_call_operand.vmem [shape: bf16[384,192], index: 1, kind: input, shape index: {}]
  %s2 = inlined_call_operand.hbm [shape: f32[2,64,64], index: 2, kind: output, shape index: {}]
  %s3 = sld [smem:[#allocation0]]
  $region18: #{tpu_custom_call.1} parent=0
    _
  %s5 = ssub.s32 1, %s3
  %s6 = scalar_select 0, %s5, %s3
  $region1: #{tpu_custom_call.1} parent=0
    #allocation2 [shape = 'u8[65536]{0}', space=vmem, size = 0x10000, scoped, tag = 'output window, operand 0, single buffered']
    #allocation3 [shape = 's32[1]{0}', space=sflag, size = 0x4, scoped, tag = 'scoped memory for tpu_custom_call.1']
    %7 = vsyncpa [#allocation3], 0
    // Predicated region
    $region2: #{tpu_custom_call.1} parent=1 // pred_check
      _
    $region3: #{tpu_custom_call.1} parent=1 // pred_check_branch
      %9 = sbr.rel (0) target = $region5
    $region4: #{tpu_custom_call.1} parent=1 // pred_region
      _
    $region5: #{tpu_custom_call.1} parent=1 // pred_fallthru
      _
    // Predicated region
    $region6: #{tpu_custom_call.1} parent=1 // pred_check
      _
    $region7: #{tpu_custom_call.1} parent=1 // pred_check_branch
      %11 = sbr.rel (0) target = $region9
    $region8: #{tpu_custom_call.1} parent=1 // pred_region
      _
    $region9: #{tpu_custom_call.1} parent=1 // pred_fallthru
      _
    %v13 = vld [vmem:[%s0] sm:$0xff]
    %v14 = vld [vmem:[%s0 + $0x8] sm:$0xf]
    %v15 = vld [vmem:[%s0 + $0xc] sm:$0xff]
    %v16 = vld [vmem:[%s0 + $0x14] sm:$0xf]
    %v17 = vld [vmem:[%s0 + $0x18] sm:$0xff]
    %v18 = vld [vmem:[%s0 + $0x20] sm:$0xf]
    %v19 = vld [vmem:[%s0 + $0x24] sm:$0xff]
    %v20 = vld [vmem:[%s0 + $0x2c] sm:$0xf]
    %v21 = vld [vmem:[%s0 + $0x30] sm:$0xff]
    %v22 = vld [vmem:[%s0 + $0x38] sm:$0xf]
    %v23 = vld [vmem:[%s0 + $0x3c] sm:$0xff]
    %v24 = vld [vmem:[%s0 + $0x44] sm:$0xf]
    %v25 = vld [vmem:[%s0 + $0x48] sm:$0xff]
    %v26 = vld [vmem:[%s0 + $0x50] sm:$0xf]
    %v27 = vld [vmem:[%s0 + $0x54] sm:$0xff]
    %v28 = vld [vmem:[%s0 + $0x5c] sm:$0xf]
    %v29 = vld [vmem:[%s0 + $0x60] sm:$0xff]
    %v30 = vld [vmem:[%s0 + $0x68] sm:$0xf]
    %v31 = vld [vmem:[%s0 + $0x6c] sm:$0xff]
    %v32 = vld [vmem:[%s0 + $0x74] sm:$0xf]
    %v33 = vld [vmem:[%s0 + $0x78] sm:$0xff]
    %v34 = vld [vmem:[%s0 + $0x80] sm:$0xf]
    %v35 = vld [vmem:[%s0 + $0x84] sm:$0xff]
    %v36 = vld [vmem:[%s0 + $0x8c] sm:$0xf]
    %v37 = vld [vmem:[%s0 + $0x90] sm:$0xff]
    %v38 = vld [vmem:[%s0 + $0x98] sm:$0xf]
    %v39 = vld [vmem:[%s0 + $0x9c] sm:$0xff]
    %v40 = vld [vmem:[%s0 + $0xa4] sm:$0xf]
    %v41 = vld [vmem:[%s0 + $0xa8] sm:$0xff]
    %v42 = vld [vmem:[%s0 + $0xb0] sm:$0xf]
    %v43 = vld [vmem:[%s0 + $0xb4] sm:$0xff]
    %v44 = vld [vmem:[%s0 + $0xbc] sm:$0xf]
    %v45 = vld [vmem:[%s1] sm:$0xff]
    %v46 = vld [vmem:[%s1 + $0x8] sm:$0xff]
    %v47 = vld [vmem:[%s1 + $0x10] sm:$0xff]
    %v48 = vld [vmem:[%s1 + $0x18] sm:$0xff]
    %v49 = vld [vmem:[%s1 + $0x20] sm:$0xff]
    %v50 = vld [vmem:[%s1 + $0x28] sm:$0xff]
    %v51 = vld [vmem:[%s1 + $0x30] sm:$0xff]
    %v52 = vld [vmem:[%s1 + $0x38] sm:$0xff]
    %v53 = vld [vmem:[%s1 + $0x40] sm:$0xff]
    %v54 = vld [vmem:[%s1 + $0x48] sm:$0xff]
    %v55 = vld [vmem:[%s1 + $0x50] sm:$0xff]
    %v56 = vld [vmem:[%s1 + $0x58] sm:$0xff]
    %v57 = vld [vmem:[%s1 + $0x60] sm:$0xff]
    %v58 = vld [vmem:[%s1 + $0x68] sm:$0xff]
    %v59 = vld [vmem:[%s1 + $0x70] sm:$0xff]
    %v60 = vld [vmem:[%s1 + $0x78] sm:$0xff]
    %v61 = vld [vmem:[%s1 + $0x80] sm:$0xff]
    %v62 = vld [vmem:[%s1 + $0x88] sm:$0xff]
    %v63 = vld [vmem:[%s1 + $0x90] sm:$0xff]
    %v64 = vld [vmem:[%s1 + $0x98] sm:$0xff]
    %v65 = vld [vmem:[%s1 + $0xa0] sm:$0xff]
    %v66 = vld [vmem:[%s1 + $0xa8] sm:$0xff]
    %v67 = vld [vmem:[%s1 + $0xb0] sm:$0xff]
    %v68 = vld [vmem:[%s1 + $0xb8] sm:$0xff]
    %v69 = vld [vmem:[%s1 + $0xc0] sm:$0xff]
    %v70 = vld [vmem:[%s1 + $0xc8] sm:$0xff]
    %v71 = vld [vmem:[%s1 + $0xd0] sm:$0xff]
    %v72 = vld [vmem:[%s1 + $0xd8] sm:$0xff]
    %v73 = vld [vmem:[%s1 + $0xe0] sm:$0xff]
    %v74 = vld [vmem:[%s1 + $0xe8] sm:$0xff]
    %v75 = vld [vmem:[%s1 + $0xf0] sm:$0xff]
    %v76 = vld [vmem:[%s1 + $0xf8] sm:$0xff]
    %v77 = vld [vmem:[%s1 + $0x100] sm:$0xff]
    %v78 = vld [vmem:[%s1 + $0x108] sm:$0xff]
    %v79 = vld [vmem:[%s1 + $0x110] sm:$0xff]
    %v80 = vld [vmem:[%s1 + $0x118] sm:$0xff]
    %v81 = vld [vmem:[%s1 + $0x120] sm:$0xff]
    %v82 = vld [vmem:[%s1 + $0x128] sm:$0xff]
    %v83 = vld [vmem:[%s1 + $0x130] sm:$0xff]
    %v84 = vld [vmem:[%s1 + $0x138] sm:$0xff]
    %v85 = vld [vmem:[%s1 + $0x140] sm:$0xff]
    %v86 = vld [vmem:[%s1 + $0x148] sm:$0xff]
    %v87 = vld [vmem:[%s1 + $0x150] sm:$0xff]
    %v88 = vld [vmem:[%s1 + $0x158] sm:$0xff]
    %v89 = vld [vmem:[%s1 + $0x160] sm:$0xff]
    %v90 = vld [vmem:[%s1 + $0x168] sm:$0xff]
    %v91 = vld [vmem:[%s1 + $0x170] sm:$0xff]
    %v92 = vld [vmem:[%s1 + $0x178] sm:$0xff]
    %v125 = vunpack.c.l.b16 %v13
    %v126 = vunpack.c.h.b16 %v13
    %v127 = vunpack.c.l.b16 %v14
    %v128 = vunpack.c.l.b16 %v15
    %v129 = vunpack.c.h.b16 %v15
    %v130 = vunpack.c.l.b16 %v16
    %v131 = vunpack.c.l.b16 %v17
    %v132 = vunpack.c.h.b16 %v17
    %v133 = vunpack.c.l.b16 %v18
    %v134 = vunpack.c.l.b16 %v19
    %v135 = vunpack.c.h.b16 %v19
    %v136 = vunpack.c.l.b16 %v20
    %v137 = vunpack.c.l.b16 %v21
    %v138 = vunpack.c.h.b16 %v21
    %v139 = vunpack.c.l.b16 %v22
    %v140 = vunpack.c.l.b16 %v23
    %v141 = vunpack.c.h.b16 %v23
    %v142 = vunpack.c.l.b16 %v24
    %v143 = vunpack.c.l.b16 %v25
    %v144 = vunpack.c.h.b16 %v25
    %v145 = vunpack.c.l.b16 %v26
    %v146 = vunpack.c.l.b16 %v27
    %v147 = vunpack.c.h.b16 %v27
    %v148 = vunpack.c.l.b16 %v28
    %v149 = vunpack.c.l.b16 %v29
    %v150 = vunpack.c.h.b16 %v29
    %v151 = vunpack.c.l.b16 %v30
    %v152 = vunpack.c.l.b16 %v31
    %v153 = vunpack.c.h.b16 %v31
    %v154 = vunpack.c.l.b16 %v32
    %v155 = vunpack.c.l.b16 %v33
    %v156 = vunpack.c.h.b16 %v33
    %v157 = vunpack.c.l.b16 %v34
    %v158 = vunpack.c.l.b16 %v35
    %v159 = vunpack.c.h.b16 %v35
    %v160 = vunpack.c.l.b16 %v36
    %v161 = vunpack.c.l.b16 %v37
    %v162 = vunpack.c.h.b16 %v37
    %v163 = vunpack.c.l.b16 %v38
    %v164 = vunpack.c.l.b16 %v39
    %v165 = vunpack.c.h.b16 %v39
    %v166 = vunpack.c.l.b16 %v40
    %v167 = vunpack.c.l.b16 %v41
    %v168 = vunpack.c.h.b16 %v41
    %v169 = vunpack.c.l.b16 %v42
    %v170 = vunpack.c.l.b16 %v43
    %v171 = vunpack.c.h.b16 %v43
    %v172 = vunpack.c.l.b16 %v44
    %v173 = vpack.c.b16 %v128, %v125
    %v174 = vpack.c.b16 %v129, %v126
    %v175 = vpack.c.b16 %v130, %v127
    %v176 = vpack.c.b16 %v134, %v131
    %v177 = vpack.c.b16 %v135, %v132
    %v178 = vpack.c.b16 %v136, %v133
    %v179 = vpack.c.b16 %v140, %v137
    %v180 = vpack.c.b16 %v141, %v138
    %v181 = vpack.c.b16 %v142, %v139
    %v182 = vpack.c.b16 %v146, %v143
    %v183 = vpack.c.b16 %v147, %v144
    %v184 = vpack.c.b16 %v148, %v145
    %v185 = vpack.c.b16 %v152, %v149
    %v186 = vpack.c.b16 %v153, %v150
    %v187 = vpack.c.b16 %v154, %v151
    %v188 = vpack.c.b16 %v158, %v155
    %v189 = vpack.c.b16 %v159, %v156
    %v190 = vpack.c.b16 %v160, %v157
    %v191 = vpack.c.b16 %v164, %v161
    %v192 = vpack.c.b16 %v165, %v162
    %v193 = vpack.c.b16 %v166, %v163
    %v194 = vpack.c.b16 %v170, %v167
    %v195 = vpack.c.b16 %v171, %v168
    %v196 = vpack.c.b16 %v172, %v169
    %v269 = vunpack.c.l.b16 %v45
    %v270 = vunpack.c.h.b16 %v45
    %v271 = vunpack.c.l.b16 %v46
    %v272 = vunpack.c.h.b16 %v46
    %v273 = vunpack.c.l.b16 %v47
    %v274 = vunpack.c.h.b16 %v47
    %v275 = vunpack.c.l.b16 %v48
    %v276 = vunpack.c.h.b16 %v48
    %v277 = vunpack.c.l.b16 %v49
    %v278 = vunpack.c.h.b16 %v49
    %v279 = vunpack.c.l.b16 %v50
    %v280 = vunpack.c.h.b16 %v50
    %v281 = vunpack.c.l.b16 %v51
    %v282 = vunpack.c.h.b16 %v51
    %v283 = vunpack.c.l.b16 %v52
    %v284 = vunpack.c.h.b16 %v52
    %v285 = vunpack.c.l.b16 %v53
    %v286 = vunpack.c.h.b16 %v53
    %v287 = vunpack.c.l.b16 %v54
    %v288 = vunpack.c.h.b16 %v54
    %v289 = vunpack.c.l.b16 %v55
    %v290 = vunpack.c.h.b16 %v55
    %v291 = vunpack.c.l.b16 %v56
    %v292 = vunpack.c.h.b16 %v56
    %v293 = vunpack.c.l.b16 %v57
    %v294 = vunpack.c.h.b16 %v57
    %v295 = vunpack.c.l.b16 %v58
    %v296 = vunpack.c.h.b16 %v58
    %v297 = vunpack.c.l.b16 %v59
    %v298 = vunpack.c.h.b16 %v59
    %v299 = vunpack.c.l.b16 %v60
    %v300 = vunpack.c.h.b16 %v60
    %v301 = vunpack.c.l.b16 %v61
    %v302 = vunpack.c.h.b16 %v61
    %v303 = vunpack.c.l.b16 %v62
    %v304 = vunpack.c.h.b16 %v62
    %v305 = vunpack.c.l.b16 %v63
    %v306 = vunpack.c.h.b16 %v63
    %v307 = vunpack.c.l.b16 %v64
    %v308 = vunpack.c.h.b16 %v64
    %v309 = vunpack.c.l.b16 %v65
    %v310 = vunpack.c.h.b16 %v65
    %v311 = vunpack.c.l.b16 %v66
    %v312 = vunpack.c.h.b16 %v66
    %v313 = vunpack.c.l.b16 %v67
    %v314 = vunpack.c.h.b16 %v67
    %v315 = vunpack.c.l.b16 %v68
    %v316 = vunpack.c.h.b16 %v68
    %v317 = vunpack.c.l.b16 %v69
    %v318 = vunpack.c.h.b16 %v69
    %v319 = vunpack.c.l.b16 %v70
    %v320 = vunpack.c.h.b16 %v70
    %v321 = vunpack.c.l.b16 %v71
    %v322 = vunpack.c.h.b16 %v71
    %v323 = vunpack.c.l.b16 %v72
    %v324 = vunpack.c.h.b16 %v72
    %v325 = vunpack.c.l.b16 %v73
    %v326 = vunpack.c.h.b16 %v73
    %v327 = vunpack.c.l.b16 %v74
    %v328 = vunpack.c.h.b16 %v74
    %v329 = vunpack.c.l.b16 %v75
    %v330 = vunpack.c.h.b16 %v75
    %v331 = vunpack.c.l.b16 %v76
    %v332 = vunpack.c.h.b16 %v76
    %v333 = vunpack.c.l.b16 %v77
    %v334 = vunpack.c.h.b16 %v77
    %v335 = vunpack.c.l.b16 %v78
    %v336 = vunpack.c.h.b16 %v78
    %v337 = vunpack.c.l.b16 %v79
    %v338 = vunpack.c.h.b16 %v79
    %v339 = vunpack.c.l.b16 %v80
    %v340 = vunpack.c.h.b16 %v80
    %v341 = vunpack.c.l.b16 %v81
    %v342 = vunpack.c.h.b16 %v81
    %v343 = vunpack.c.l.b16 %v82
    %v344 = vunpack.c.h.b16 %v82
    %v345 = vunpack.c.l.b16 %v83
    %v346 = vunpack.c.h.b16 %v83
    %v347 = vunpack.c.l.b16 %v84
    %v348 = vunpack.c.h.b16 %v84
    %v349 = vunpack.c.l.b16 %v85
    %v350 = vunpack.c.h.b16 %v85
    %v351 = vunpack.c.l.b16 %v86
    %v352 = vunpack.c.h.b16 %v86
    %v353 = vunpack.c.l.b16 %v87
    %v354 = vunpack.c.h.b16 %v87
    %v355 = vunpack.c.l.b16 %v88
    %v356 = vunpack.c.h.b16 %v88
    %v357 = vunpack.c.l.b16 %v89
    %v358 = vunpack.c.h.b16 %v89
    %v359 = vunpack.c.l.b16 %v90
    %v360 = vunpack.c.h.b16 %v90
    %v361 = vunpack.c.l.b16 %v91
    %v362 = vunpack.c.h.b16 %v91
    %v363 = vunpack.c.l.b16 %v92
    %v364 = vunpack.c.h.b16 %v92
    %v365 = vpack.c.b16 %v271, %v269
    %v366 = vpack.c.b16 %v272, %v270
    %v367 = vpack.c.b16 %v275, %v273
    %v368 = vpack.c.b16 %v276, %v274
    %v369 = vpack.c.b16 %v279, %v277
    %v370 = vpack.c.b16 %v280, %v278
    %v371 = vpack.c.b16 %v283, %v281
    %v372 = vpack.c.b16 %v284, %v282
    %v373 = vpack.c.b16 %v287, %v285
    %v374 = vpack.c.b16 %v288, %v286
    %v375 = vpack.c.b16 %v291, %v289
    %v376 = vpack.c.b16 %v292, %v290
    %v377 = vpack.c.b16 %v295, %v293
    %v378 = vpack.c.b16 %v296, %v294
    %v379 = vpack.c.b16 %v299, %v297
    %v380 = vpack.c.b16 %v300, %v298
    %v381 = vpack.c.b16 %v303, %v301
    %v382 = vpack.c.b16 %v304, %v302
    %v383 = vpack.c.b16 %v307, %v305
    %v384 = vpack.c.b16 %v308, %v306
    %v385 = vpack.c.b16 %v311, %v309
    %v386 = vpack.c.b16 %v312, %v310
    %v387 = vpack.c.b16 %v315, %v313
    %v388 = vpack.c.b16 %v316, %v314
    %v389 = vpack.c.b16 %v319, %v317
    %v390 = vpack.c.b16 %v320, %v318
    %v391 = vpack.c.b16 %v323, %v321
    %v392 = vpack.c.b16 %v324, %v322
    %v393 = vpack.c.b16 %v327, %v325
    %v394 = vpack.c.b16 %v328, %v326
    %v395 = vpack.c.b16 %v331, %v329
    %v396 = vpack.c.b16 %v332, %v330
    %v397 = vpack.c.b16 %v335, %v333
    %v398 = vpack.c.b16 %v336, %v334
    %v399 = vpack.c.b16 %v339, %v337
    %v400 = vpack.c.b16 %v340, %v338
    %v401 = vpack.c.b16 %v343, %v341
    %v402 = vpack.c.b16 %v344, %v342
    %v403 = vpack.c.b16 %v347, %v345
    %v404 = vpack.c.b16 %v348, %v346
    %v405 = vpack.c.b16 %v351, %v349
    %v406 = vpack.c.b16 %v352, %v350
    %v407 = vpack.c.b16 %v355, %v353
    %v408 = vpack.c.b16 %v356, %v354
    %v409 = vpack.c.b16 %v359, %v357
    %v410 = vpack.c.b16 %v360, %v358
    %v411 = vpack.c.b16 %v363, %v361
    %v412 = vpack.c.b16 %v364, %v362
    %461 = vmatprep.subr.bf16.mxu0 %v380
    %462 = vmatpush1.bf16.msra.mxu0 %v379
    %463 = vmatprep.subr.bf16.mxu0 %v378
    %464 = vmatpush1.bf16.msra.mxu0 %v377
    %465 = vmatprep.subr.bf16.mxu0 %v376
    %466 = vmatpush1.bf16.msra.mxu0 %v375
    %467 = vmatprep.subr.bf16.mxu0 %v374
    %468 = vmatpush1.bf16.msra.mxu0 %v373
    %469 = vmatprep.subr.bf16.mxu0 %v372
    %470 = vmatpush1.bf16.msra.mxu0 %v371
    %471 = vmatprep.subr.bf16.mxu0 %v370
    %472 = vmatpush1.bf16.msra.mxu0 %v369
    %473 = vmatprep.subr.bf16.mxu0 %v368
    %474 = vmatpush1.bf16.msra.mxu0 %v367
    %475 = vmatprep.subr.bf16.mxu0 %v366
    %476 = vmatpush1.bf16.msra.mxu0 %v365
    %477 = vmatprep.subr.bf16.mxu0 %v396
    %478 = vmatpush2.bf16.msra.mxu0 %v395
    %479 = vmatprep.subr.bf16.mxu0 %v394
    %480 = vmatpush2.bf16.msra.mxu0 %v393
    %481 = vmatprep.subr.bf16.mxu0 %v392
    %482 = vmatpush2.bf16.msra.mxu0 %v391
    %483 = vmatprep.subr.bf16.mxu0 %v390
    %484 = vmatpush2.bf16.msra.mxu0 %v389
    %485 = vmatprep.subr.bf16.mxu0 %v388
    %486 = vmatpush2.bf16.msra.mxu0 %v387
    %487 = vmatprep.subr.bf16.mxu0 %v386
    %488 = vmatpush2.bf16.msra.mxu0 %v385
    %489 = vmatprep.subr.bf16.mxu0 %v384
    %490 = vmatpush2.bf16.msra.mxu0 %v383
    %491 = vmatprep.subr.bf16.mxu0 %v382
    %492 = vmatpush2.bf16.msra.mxu0 %v381
    %493 = vmatprep.mubr.bf16.mxu0 %v174
    %494 = vmatmul.mubr.bf16.gmra.mxu0 %v173
    %v495 = vpop.f32.mrf.mxu0
    %v496 = vadd.f32 0.0, %v495
    %v497 = vpop.f32.mrf.mxu0
    %v498 = vadd.f32 0.0, %v497
    %v499 = vpop.f32.mrf.mxu0
    %v500 = vadd.f32 0.0, %v499
    %v501 = vpop.f32.mrf.mxu0
    %v502 = vadd.f32 0.0, %v501
    %503 = vmatprep.mubr.bf16.mxu0 %v177
    %504 = vmatmul.mubr.bf16.gmra.mxu0 %v176
    %v505 = vpop.f32.mrf.mxu0
    %v506 = vadd.f32 0.0, %v505
    %v507 = vpop.f32.mrf.mxu0
    %v508 = vadd.f32 0.0, %v507
    %v509 = vpop.f32.mrf.mxu0
    %v510 = vadd.f32 0.0, %v509
    %v511 = vpop.f32.mrf.mxu0
    %v512 = vadd.f32 0.0, %v511
    %513 = vmatprep.mubr.bf16.mxu0 %v180
    %514 = vmatmul.mubr.bf16.gmra.mxu0 %v179
    %v515 = vpop.f32.mrf.mxu0
    %v516 = vadd.f32 0.0, %v515
    %v517 = vpop.f32.mrf.mxu0
    %v518 = vadd.f32 0.0, %v517
    %v519 = vpop.f32.mrf.mxu0
    %v520 = vadd.f32 0.0, %v519
    %v521 = vpop.f32.mrf.mxu0
    %v522 = vadd.f32 0.0, %v521
    %523 = vmatprep.mubr.bf16.mxu0 %v183
    %524 = vmatmul.mubr.bf16.gmra.mxu0 %v182
    %v525 = vpop.f32.mrf.mxu0
    %v526 = vadd.f32 0.0, %v525
    %v527 = vpop.f32.mrf.mxu0
    %v528 = vadd.f32 0.0, %v527
    %v529 = vpop.f32.mrf.mxu0
    %v530 = vadd.f32 0.0, %v529
    %v531 = vpop.f32.mrf.mxu0
    %v532 = vadd.f32 0.0, %v531
    %533 = vmatprep.mubr.bf16.mxu0 %v186
    %534 = vmatmul.mubr.bf16.gmra.mxu0 %v185
    %v535 = vpop.f32.mrf.mxu0
    %v536 = vadd.f32 0.0, %v535
    %v537 = vpop.f32.mrf.mxu0
    %v538 = vadd.f32 0.0, %v537
    %v539 = vpop.f32.mrf.mxu0
    %v540 = vadd.f32 0.0, %v539
    %v541 = vpop.f32.mrf.mxu0
    %v542 = vadd.f32 0.0, %v541
    %543 = vmatprep.mubr.bf16.mxu0 %v189
    %544 = vmatmul.mubr.bf16.gmra.mxu0 %v188
    %v545 = vpop.f32.mrf.mxu0
    %v546 = vadd.f32 0.0, %v545
    %v547 = vpop.f32.mrf.mxu0
    %v548 = vadd.f32 0.0, %v547
    %v549 = vpop.f32.mrf.mxu0
    %v550 = vadd.f32 0.0, %v549
    %v551 = vpop.f32.mrf.mxu0
    %v552 = vadd.f32 0.0, %v551
    %553 = vmatprep.mubr.bf16.mxu0 %v192
    %554 = vmatmul.mubr.bf16.gmra.mxu0 %v191
    %v555 = vpop.f32.mrf.mxu0
    %v556 = vadd.f32 0.0, %v555
    %v557 = vpop.f32.mrf.mxu0
    %v558 = vadd.f32 0.0, %v557
    %v559 = vpop.f32.mrf.mxu0
    %v560 = vadd.f32 0.0, %v559
    %v561 = vpop.f32.mrf.mxu0
    %v562 = vadd.f32 0.0, %v561
    %563 = vmatprep.mubr.bf16.mxu0 %v195
    %564 = vmatmul.mubr.bf16.gmra.mxu0 %v194
    %v565 = vpop.f32.mrf.mxu0
    %v566 = vadd.f32 0.0, %v565
    %v567 = vpop.f32.mrf.mxu0
    %v568 = vadd.f32 0.0, %v567
    %v569 = vpop.f32.mrf.mxu0
    %v570 = vadd.f32 0.0, %v569
    %v571 = vpop.f32.mrf.mxu0
    %v572 = vadd.f32 0.0, %v571
    %573 = vdwg.mxu0
    %574 = vmatprep.subr.bf16.mxu0 %v412
    %575 = vmatpush1.bf16.msra.mxu0 %v411
    %576 = vmatprep.subr.bf16.mxu0 %v410
    %577 = vmatpush1.bf16.msra.mxu0 %v409
    %578 = vmatprep.subr.bf16.mxu0 %v408
    %579 = vmatpush1.bf16.msra.mxu0 %v407
    %580 = vmatprep.subr.bf16.mxu0 %v406
    %581 = vmatpush1.bf16.msra.mxu0 %v405
    %582 = vmatprep.subr.bf16.mxu0 %v404
    %583 = vmatpush1.bf16.msra.mxu0 %v403
    %584 = vmatprep.subr.bf16.mxu0 %v402
    %585 = vmatpush1.bf16.msra.mxu0 %v401
    %586 = vmatprep.subr.bf16.mxu0 %v400
    %587 = vmatpush1.bf16.msra.mxu0 %v399
    %588 = vmatprep.subr.bf16.mxu0 %v398
    %589 = vmatpush1.bf16.msra.mxu0 %v397
    %590 = vmatprep.subr.bf16.mxu0 0
    %591 = vmatpush2.bf16.msra.mxu0 0
    %592 = vmatprep.subr.bf16.mxu0 0
    %593 = vmatpush2.bf16.msra.mxu0 0
    %594 = vmatprep.subr.bf16.mxu0 0
    %595 = vmatpush2.bf16.msra.mxu0 0
    %596 = vmatprep.subr.bf16.mxu0 0
    %597 = vmatpush2.bf16.msra.mxu0 0
    %598 = vmatprep.subr.bf16.mxu0 0
    %599 = vmatpush2.bf16.msra.mxu0 0
    %600 = vmatprep.subr.bf16.mxu0 0
    %601 = vmatpush2.bf16.msra.mxu0 0
    %602 = vmatprep.subr.bf16.mxu0 0
    %603 = vmatpush2.bf16.msra.mxu0 0
    %604 = vmatprep.subr.bf16.mxu0 0
    %605 = vmatpush2.bf16.msra.mxu0 0
    %606 = vmatprep.mubr.bf16.mxu0 0
    %607 = vmatmul.mubr.bf16.gmra.mxu0 %v175
    %v608 = vpop.f32.mrf.mxu0
    %v609 = vadd.f32 %v496, %v608
    %v610 = vpop.f32.mrf.mxu0
    %v611 = vadd.f32 %v498, %v610
    %v612 = vpop.f32.mrf.mxu0
    %v613 = vadd.f32 %v500, %v612
    %v614 = vpop.f32.mrf.mxu0
    %v615 = vadd.f32 %v502, %v614
    %616 = vmatprep.mubr.bf16.mxu0 0
    %617 = vmatmul.mubr.bf16.gmra.mxu0 %v178
    %v618 = vpop.f32.mrf.mxu0
    %v619 = vadd.f32 %v506, %v618
    %v620 = vpop.f32.mrf.mxu0
    %v621 = vadd.f32 %v508, %v620
    %v622 = vpop.f32.mrf.mxu0
    %v623 = vadd.f32 %v510, %v622
    %v624 = vpop.f32.mrf.mxu0
    %v625 = vadd.f32 %v512, %v624
    %626 = vmatprep.mubr.bf16.mxu0 0
    %627 = vmatmul.mubr.bf16.gmra.mxu0 %v181
    %v628 = vpop.f32.mrf.mxu0
    %v629 = vadd.f32 %v516, %v628
    %v630 = vpop.f32.mrf.mxu0
    %v631 = vadd.f32 %v518, %v630
    %v632 = vpop.f32.mrf.mxu0
    %v633 = vadd.f32 %v520, %v632
    %v634 = vpop.f32.mrf.mxu0
    %v635 = vadd.f32 %v522, %v634
    %636 = vmatprep.mubr.bf16.mxu0 0
    %637 = vmatmul.mubr.bf16.gmra.mxu0 %v184
    %v638 = vpop.f32.mrf.mxu0
    %v639 = vadd.f32 %v526, %v638
    %v640 = vpop.f32.mrf.mxu0
    %v641 = vadd.f32 %v528, %v640
    %v642 = vpop.f32.mrf.mxu0
    %v643 = vadd.f32 %v530, %v642
    %v644 = vpop.f32.mrf.mxu0
    %v645 = vadd.f32 %v532, %v644
    %646 = vmatprep.mubr.bf16.mxu0 0
    %647 = vmatmul.mubr.bf16.gmra.mxu0 %v187
    %v648 = vpop.f32.mrf.mxu0
    %v649 = vadd.f32 %v536, %v648
    %v650 = vpop.f32.mrf.mxu0
    %v651 = vadd.f32 %v538, %v650
    %v652 = vpop.f32.mrf.mxu0
    %v653 = vadd.f32 %v540, %v652
    %v654 = vpop.f32.mrf.mxu0
    %v655 = vadd.f32 %v542, %v654
    %656 = vmatprep.mubr.bf16.mxu0 0
    %657 = vmatmul.mubr.bf16.gmra.mxu0 %v190
    %v658 = vpop.f32.mrf.mxu0
    %v659 = vadd.f32 %v546, %v658
    %v660 = vpop.f32.mrf.mxu0
    %v661 = vadd.f32 %v548, %v660
    %v662 = vpop.f32.mrf.mxu0
    %v663 = vadd.f32 %v550, %v662
    %v664 = vpop.f32.mrf.mxu0
    %v665 = vadd.f32 %v552, %v664
    %666 = vmatprep.mubr.bf16.mxu0 0
    %667 = vmatmul.mubr.bf16.gmra.mxu0 %v193
    %v668 = vpop.f32.mrf.mxu0
    %v669 = vadd.f32 %v556, %v668
    %v670 = vpop.f32.mrf.mxu0
    %v671 = vadd.f32 %v558, %v670
    %v672 = vpop.f32.mrf.mxu0
    %v673 = vadd.f32 %v560, %v672
    %v674 = vpop.f32.mrf.mxu0
    %v675 = vadd.f32 %v562, %v674
    %676 = vmatprep.mubr.bf16.mxu0 0
    %677 = vmatmul.mubr.bf16.gmra.mxu0 %v196
    %v678 = vpop.f32.mrf.mxu0
    %v679 = vadd.f32 %v566, %v678
    %v680 = vpop.f32.mrf.mxu0
    %v681 = vadd.f32 %v568, %v680
    %v682 = vpop.f32.mrf.mxu0
    %v683 = vadd.f32 %v570, %v682
    %v684 = vpop.f32.mrf.mxu0
    %v685 = vadd.f32 %v572, %v684
    %686 = vdwg.mxu0
    %v687 = vpack.c.bf16 %v613, %v609
    %v688 = vpack.c.bf16 %v623, %v619
    %v689 = vpack.c.bf16 %v633, %v629
    %v690 = vpack.c.bf16 %v643, %v639
    %v691 = vpack.c.bf16 %v653, %v649
    %v692 = vpack.c.bf16 %v663, %v659
    %v693 = vpack.c.bf16 %v673, %v669
    %v694 = vpack.c.bf16 %v683, %v679
    %699 = vrot.lane.b32.xlu0 %v687, 64
    %v700 = vpop.permute.xlu0 %699
    %701 = vrot.lane.b32.xlu0 %v688, 64
    %v702 = vpop.permute.xlu0 %701
    %703 = vrot.lane.b32.xlu0 %v689, 64
    %v704 = vpop.permute.xlu0 %703
    %705 = vrot.lane.b32.xlu0 %v690, 64
    %v706 = vpop.permute.xlu0 %705
    %vm707 = vcmask 523264
    %v709 = vsel %vm707, %v687, 0
    %v712 = vsel %vm707, %v688, 0
    %v715 = vsel %vm707, %v689, 0
    %v718 = vsel %vm707, %v690, 0
    %v721 = vsel %vm707, %v700, 0
    %v724 = vsel %vm707, %v702, 0
    %v727 = vsel %vm707, %v704, 0
    %v730 = vsel %vm707, %v706, 0
    %732 = vmatprep.subr.bf16.mxu0 0
    %733 = vmatpush1.bf16.xpose.msra.mxu0 0
    %734 = vmatprep.subr.bf16.mxu0 0
    %735 = vmatpush1.bf16.xpose.msra.mxu0 0
    %736 = vmatprep.subr.bf16.mxu0 0
    %737 = vmatpush1.bf16.xpose.msra.mxu0 0
    %738 = vmatprep.subr.bf16.mxu0 0
    %739 = vmatpush1.bf16.xpose.msra.mxu0 0
    %740 = vmatprep.subr.bf16.mxu0 0
    %741 = vmatpush1.bf16.xpose.msra.mxu0 %v730
    %742 = vmatprep.subr.bf16.mxu0 0
    %743 = vmatpush1.bf16.xpose.msra.mxu0 %v727
    %744 = vmatprep.subr.bf16.mxu0 0
    %745 = vmatpush1.bf16.xpose.msra.mxu0 %v724
    %746 = vmatprep.subr.bf16.mxu0 0
    %747 = vmatpush1.bf16.xpose.msra.mxu0 %v721
    %748 = vmatprep.subr.bf16.mxu0 0
    %749 = vmatpush2.bf16.xpose.msra.mxu0 0
    %750 = vmatprep.subr.bf16.mxu0 0
    %751 = vmatpush2.bf16.xpose.msra.mxu0 0
    %752 = vmatprep.subr.bf16.mxu0 0
    %753 = vmatpush2.bf16.xpose.msra.mxu0 0
    %754 = vmatprep.subr.bf16.mxu0 0
    %755 = vmatpush2.bf16.xpose.msra.mxu0 0
    %756 = vmatprep.subr.bf16.mxu0 0
    %757 = vmatpush2.bf16.xpose.msra.mxu0 0
    %758 = vmatprep.subr.bf16.mxu0 0
    %759 = vmatpush2.bf16.xpose.msra.mxu0 0
    %760 = vmatprep.subr.bf16.mxu0 0
    %761 = vmatpush2.bf16.xpose.msra.mxu0 0
    %762 = vmatprep.subr.bf16.mxu0 0
    %763 = vmatpush2.bf16.xpose.msra.mxu0 0
    %764 = vmatprep.mubr.bf16.mxu0 0
    %765 = vmatmul.mubr.bf16.gmra.mxu0 %v709
    %v766 = vpop.f32.mrf.mxu0
    %v767 = vadd.f32 0.0, %v766
    %v768 = vpop.f32.mrf.mxu0
    %v769 = vpop.f32.mrf.mxu0
    %v770 = vadd.f32 0.0, %v769
    %v771 = vpop.f32.mrf.mxu0
    %772 = vmatprep.mubr.bf16.mxu0 0
    %773 = vmatmul.mubr.bf16.gmra.mxu0 %v712
    %v774 = vpop.f32.mrf.mxu0
    %v775 = vadd.f32 0.0, %v774
    %v776 = vpop.f32.mrf.mxu0
    %v777 = vpop.f32.mrf.mxu0
    %v778 = vadd.f32 0.0, %v777
    %v779 = vpop.f32.mrf.mxu0
    %780 = vmatprep.mubr.bf16.mxu0 0
    %781 = vmatmul.mubr.bf16.gmra.mxu0 %v715
    %v782 = vpop.f32.mrf.mxu0
    %v783 = vadd.f32 0.0, %v782
    %v784 = vpop.f32.mrf.mxu0
    %v785 = vpop.f32.mrf.mxu0
    %v786 = vadd.f32 0.0, %v785
    %v787 = vpop.f32.mrf.mxu0
    %788 = vmatprep.mubr.bf16.mxu0 0
    %789 = vmatmul.mubr.bf16.gmra.mxu0 %v718
    %v790 = vpop.f32.mrf.mxu0
    %v791 = vadd.f32 0.0, %v790
    %v792 = vpop.f32.mrf.mxu0
    %v793 = vpop.f32.mrf.mxu0
    %v794 = vadd.f32 0.0, %v793
    %v795 = vpop.f32.mrf.mxu0
    %796 = vdwg.mxu0
    %801 = vrot.lane.b32.xlu0 %v691, 64
    %v802 = vpop.permute.xlu0 %801
    %803 = vrot.lane.b32.xlu0 %v692, 64
    %v804 = vpop.permute.xlu0 %803
    %805 = vrot.lane.b32.xlu0 %v693, 64
    %v806 = vpop.permute.xlu0 %805
    %807 = vrot.lane.b32.xlu0 %v694, 64
    %v808 = vpop.permute.xlu0 %807
    %v810 = vsel %vm707, %v691, 0
    %v813 = vsel %vm707, %v692, 0
    %v816 = vsel %vm707, %v693, 0
    %v819 = vsel %vm707, %v694, 0
    %v822 = vsel %vm707, %v802, 0
    %v825 = vsel %vm707, %v804, 0
    %v828 = vsel %vm707, %v806, 0
    %v831 = vsel %vm707, %v808, 0
    %833 = vmatprep.subr.bf16.mxu0 0
    %834 = vmatpush1.bf16.xpose.msra.mxu0 0
    %835 = vmatprep.subr.bf16.mxu0 0
    %836 = vmatpush1.bf16.xpose.msra.mxu0 0
    %837 = vmatprep.subr.bf16.mxu0 0
    %838 = vmatpush1.bf16.xpose.msra.mxu0 0
    %839 = vmatprep.subr.bf16.mxu0 0
    %840 = vmatpush1.bf16.xpose.msra.mxu0 0
    %841 = vmatprep.subr.bf16.mxu0 0
    %842 = vmatpush1.bf16.xpose.msra.mxu0 %v831
    %843 = vmatprep.subr.bf16.mxu0 0
    %844 = vmatpush1.bf16.xpose.msra.mxu0 %v828
    %845 = vmatprep.subr.bf16.mxu0 0
    %846 = vmatpush1.bf16.xpose.msra.mxu0 %v825
    %847 = vmatprep.subr.bf16.mxu0 0
    %848 = vmatpush1.bf16.xpose.msra.mxu0 %v822
    %849 = vmatprep.subr.bf16.mxu0 0
    %850 = vmatpush2.bf16.xpose.msra.mxu0 0
    %851 = vmatprep.subr.bf16.mxu0 0
    %852 = vmatpush2.bf16.xpose.msra.mxu0 0
    %853 = vmatprep.subr.bf16.mxu0 0
    %854 = vmatpush2.bf16.xpose.msra.mxu0 0
    %855 = vmatprep.subr.bf16.mxu0 0
    %856 = vmatpush2.bf16.xpose.msra.mxu0 0
    %857 = vmatprep.subr.bf16.mxu0 0
    %858 = vmatpush2.bf16.xpose.msra.mxu0 0
    %859 = vmatprep.subr.bf16.mxu0 0
    %860 = vmatpush2.bf16.xpose.msra.mxu0 0
    %861 = vmatprep.subr.bf16.mxu0 0
    %862 = vmatpush2.bf16.xpose.msra.mxu0 0
    %863 = vmatprep.subr.bf16.mxu0 0
    %864 = vmatpush2.bf16.xpose.msra.mxu0 0
    %865 = vmatprep.mubr.bf16.mxu0 0
    %866 = vmatmul.mubr.bf16.gmra.mxu0 %v810
    %v867 = vpop.f32.mrf.mxu0
    %v868 = vadd.f32 0.0, %v867
    %v869 = vpop.f32.mrf.mxu0
    %v870 = vpop.f32.mrf.mxu0
    %v871 = vadd.f32 0.0, %v870
    %v872 = vpop.f32.mrf.mxu0
    %873 = vmatprep.mubr.bf16.mxu0 0
    %874 = vmatmul.mubr.bf16.gmra.mxu0 %v813
    %v875 = vpop.f32.mrf.mxu0
    %v876 = vadd.f32 0.0, %v875
    %v877 = vpop.f32.mrf.mxu0
    %v878 = vpop.f32.mrf.mxu0
    %v879 = vadd.f32 0.0, %v878
    %v880 = vpop.f32.mrf.mxu0
    %881 = vmatprep.mubr.bf16.mxu0 0
    %882 = vmatmul.mubr.bf16.gmra.mxu0 %v816
    %v883 = vpop.f32.mrf.mxu0
    %v884 = vadd.f32 0.0, %v883
    %v885 = vpop.f32.mrf.mxu0
    %v886 = vpop.f32.mrf.mxu0
    %v887 = vadd.f32 0.0, %v886
    %v888 = vpop.f32.mrf.mxu0
    %889 = vmatprep.mubr.bf16.mxu0 0
    %890 = vmatmul.mubr.bf16.gmra.mxu0 %v819
    %v891 = vpop.f32.mrf.mxu0
    %v892 = vadd.f32 0.0, %v891
    %v893 = vpop.f32.mrf.mxu0
    %v894 = vpop.f32.mrf.mxu0
    %v895 = vadd.f32 0.0, %v894
    %v896 = vpop.f32.mrf.mxu0
    %897 = vdwg.mxu0
    %v898 = vlaneseq
    %v899 = vshrl.u32 %v898, 7
    %v900 = vadd.s32 %v899, 8
    %v901 = vadd.s32 %v899, 16
    %v902 = vadd.s32 %v899, 24
    %v903 = vadd.s32 %v899, 32
    %v904 = vadd.s32 %v899, 40
    %v905 = vadd.s32 %v899, 48
    %v906 = vadd.s32 %v899, 56
    %v907 = vlaneseq
    %v908 = vand.u32 %v907, 127
    %vm909 = vcmp.ge.s32.totalorder %v899, %v908
    %vm910 = vcmp.ge.s32.totalorder %v900, %v908
    %vm911 = vcmp.ge.s32.totalorder %v901, %v908
    %vm912 = vcmp.ge.s32.totalorder %v902, %v908
    %vm913 = vcmp.ge.s32.totalorder %v903, %v908
    %vm914 = vcmp.ge.s32.totalorder %v904, %v908
    %vm915 = vcmp.ge.s32.totalorder %v905, %v908
    %vm916 = vcmp.ge.s32.totalorder %v906, %v908
    %v917 = vsel %vm909, 1, 0
    %v918 = vsel %vm910, 1, 0
    %v919 = vsel %vm911, 1, 0
    %v920 = vsel %vm912, 1, 0
    %v921 = vsel %vm913, 1, 0
    %v922 = vsel %vm914, 1, 0
    %v923 = vsel %vm915, 1, 0
    %v924 = vsel %vm916, 1, 0
    %vm925 = vcmp.eq.s32.totalorder %v917, 1
    %vm926 = vcmp.eq.s32.totalorder %v918, 1
    %vm927 = vcmp.eq.s32.totalorder %v919, 1
    %vm928 = vcmp.eq.s32.totalorder %v920, 1
    %vm929 = vcmp.eq.s32.totalorder %v921, 1
    %vm930 = vcmp.eq.s32.totalorder %v922, 1
    %vm931 = vcmp.eq.s32.totalorder %v923, 1
    %vm932 = vcmp.eq.s32.totalorder %v924, 1
    %v933 = vsel %vm925, %v767, -1e+30
    %v934 = vsel %vm926, %v770, -1e+30
    %v935 = vsel %vm927, %v775, -1e+30
    %v936 = vsel %vm928, %v778, -1e+30
    %v937 = vsel %vm929, %v783, -1e+30
    %v938 = vsel %vm930, %v786, -1e+30
    %v939 = vsel %vm931, %v791, -1e+30
    %v940 = vsel %vm932, %v794, -1e+30
    %v941 = vsel %vm925, %v868, -1e+30
    %v942 = vsel %vm926, %v871, -1e+30
    %v943 = vsel %vm927, %v876, -1e+30
    %v944 = vsel %vm928, %v879, -1e+30
    %v945 = vsel %vm929, %v884, -1e+30
    %v946 = vsel %vm930, %v887, -1e+30
    %v947 = vsel %vm931, %v892, -1e+30
    %v948 = vsel %vm932, %v895, -1e+30
    %v949 = vsel %vm707, %v933, -inf
    %950 = vmax.xlane.f32.xlu0 %v949
    %v951 = vpop.xlane.xlu0 %950
    %v952 = vsel %vm707, %v934, -inf
    %953 = vmax.xlane.f32.xlu0 %v952
    %v954 = vpop.xlane.xlu0 %953
    %v955 = vsel %vm707, %v935, -inf
    %956 = vmax.xlane.f32.xlu0 %v955
    %v957 = vpop.xlane.xlu0 %956
    %v958 = vsel %vm707, %v936, -inf
    %959 = vmax.xlane.f32.xlu0 %v958
    %v960 = vpop.xlane.xlu0 %959
    %v961 = vsel %vm707, %v937, -inf
    %962 = vmax.xlane.f32.xlu0 %v961
    %v963 = vpop.xlane.xlu0 %962
    %v964 = vsel %vm707, %v938, -inf
    %965 = vmax.xlane.f32.xlu0 %v964
    %v966 = vpop.xlane.xlu0 %965
    %v967 = vsel %vm707, %v939, -inf
    %968 = vmax.xlane.f32.xlu0 %v967
    %v969 = vpop.xlane.xlu0 %968
    %v970 = vsel %vm707, %v940, -inf
    %971 = vmax.xlane.f32.xlu0 %v970
    %v972 = vpop.xlane.xlu0 %971
    %v973 = vsel %vm707, %v941, -inf
    %974 = vmax.xlane.f32.xlu0 %v973
    %v975 = vpop.xlane.xlu0 %974
    %v976 = vsel %vm707, %v942, -inf
    %977 = vmax.xlane.f32.xlu0 %v976
    %v978 = vpop.xlane.xlu0 %977
    %v979 = vsel %vm707, %v943, -inf
    %980 = vmax.xlane.f32.xlu0 %v979
    %v981 = vpop.xlane.xlu0 %980
    %v982 = vsel %vm707, %v944, -inf
    %983 = vmax.xlane.f32.xlu0 %v982
    %v984 = vpop.xlane.xlu0 %983
    %v985 = vsel %vm707, %v945, -inf
    %986 = vmax.xlane.f32.xlu0 %v985
    %v987 = vpop.xlane.xlu0 %986
    %v988 = vsel %vm707, %v946, -inf
    %989 = vmax.xlane.f32.xlu0 %v988
    %v990 = vpop.xlane.xlu0 %989
    %v991 = vsel %vm707, %v947, -inf
    %992 = vmax.xlane.f32.xlu0 %v991
    %v993 = vpop.xlane.xlu0 %992
    %v994 = vsel %vm707, %v948, -inf
    %995 = vmax.xlane.f32.xlu0 %v994
    %v996 = vpop.xlane.xlu0 %995
    %v997 = vsub.f32 %v933, %v951
    %v998 = vsub.f32 %v934, %v954
    %v999 = vsub.f32 %v935, %v957
    %v1000 = vsub.f32 %v936, %v960
    %v1001 = vsub.f32 %v937, %v963
    %v1002 = vsub.f32 %v938, %v966
    %v1003 = vsub.f32 %v939, %v969
    %v1004 = vsub.f32 %v940, %v972
    %v1005 = vsub.f32 %v941, %v975
    %v1006 = vsub.f32 %v942, %v978
    %v1007 = vsub.f32 %v943, %v981
    %v1008 = vsub.f32 %v944, %v984
    %v1009 = vsub.f32 %v945, %v987
    %v1010 = vsub.f32 %v946, %v990
    %v1011 = vsub.f32 %v947, %v993
    %v1012 = vsub.f32 %v948, %v996
    %v1013 = vmul.f32 %v997, 1.442695
    %v1014 = vpow.pop %v1013
    %v1015 = vmul.f32 %v998, 1.442695
    %v1016 = vpow.pop %v1015
    %v1017 = vmul.f32 %v999, 1.442695
    %v1018 = vpow.pop %v1017
    %v1019 = vmul.f32 %v1000, 1.442695
    %v1020 = vpow.pop %v1019
    %v1021 = vmul.f32 %v1001, 1.442695
    %v1022 = vpow.pop %v1021
    %v1023 = vmul.f32 %v1002, 1.442695
    %v1024 = vpow.pop %v1023
    %v1025 = vmul.f32 %v1003, 1.442695
    %v1026 = vpow.pop %v1025
    %v1027 = vmul.f32 %v1004, 1.442695
    %v1028 = vpow.pop %v1027
    %v1029 = vmul.f32 %v1005, 1.442695
    %v1030 = vpow.pop %v1029
    %v1031 = vmul.f32 %v1006, 1.442695
    %v1032 = vpow.pop %v1031
    %v1033 = vmul.f32 %v1007, 1.442695
    %v1034 = vpow.pop %v1033
    %v1035 = vmul.f32 %v1008, 1.442695
    %v1036 = vpow.pop %v1035
    %v1037 = vmul.f32 %v1009, 1.442695
    %v1038 = vpow.pop %v1037
    %v1039 = vmul.f32 %v1010, 1.442695
    %v1040 = vpow.pop %v1039
    %v1041 = vmul.f32 %v1011, 1.442695
    %v1042 = vpow.pop %v1041
    %v1043 = vmul.f32 %v1012, 1.442695
    %v1044 = vpow.pop %v1043
    %v1045 = vsel %vm707, %v1014, 0.0
    %1046 = vadd.xlane.f32.xlu0 %v1045
    %v1047 = vpop.xlane.xlu0 %1046
    %v1048 = vsel %vm707, %v1016, 0.0
    %1049 = vadd.xlane.f32.xlu0 %v1048
    %v1050 = vpop.xlane.xlu0 %1049
    %v1051 = vsel %vm707, %v1018, 0.0
    %1052 = vadd.xlane.f32.xlu0 %v1051
    %v1053 = vpop.xlane.xlu0 %1052
    %v1054 = vsel %vm707, %v1020, 0.0
    %1055 = vadd.xlane.f32.xlu0 %v1054
    %v1056 = vpop.xlane.xlu0 %1055
    %v1057 = vsel %vm707, %v1022, 0.0
    %1058 = vadd.xlane.f32.xlu0 %v1057
    %v1059 = vpop.xlane.xlu0 %1058
    %v1060 = vsel %vm707, %v1024, 0.0
    %1061 = vadd.xlane.f32.xlu0 %v1060
    %v1062 = vpop.xlane.xlu0 %1061
    %v1063 = vsel %vm707, %v1026, 0.0
    %1064 = vadd.xlane.f32.xlu0 %v1063
    %v1065 = vpop.xlane.xlu0 %1064
    %v1066 = vsel %vm707, %v1028, 0.0
    %1067 = vadd.xlane.f32.xlu0 %v1066
    %v1068 = vpop.xlane.xlu0 %1067
    %v1069 = vsel %vm707, %v1030, 0.0
    %1070 = vadd.xlane.f32.xlu0 %v1069
    %v1071 = vpop.xlane.xlu0 %1070
    %v1072 = vsel %vm707, %v1032, 0.0
    %1073 = vadd.xlane.f32.xlu0 %v1072
    %v1074 = vpop.xlane.xlu0 %1073
    %v1075 = vsel %vm707, %v1034, 0.0
    %1076 = vadd.xlane.f32.xlu0 %v1075
    %v1077 = vpop.xlane.xlu0 %1076
    %v1078 = vsel %vm707, %v1036, 0.0
    %1079 = vadd.xlane.f32.xlu0 %v1078
    %v1080 = vpop.xlane.xlu0 %1079
    %v1081 = vsel %vm707, %v1038, 0.0
    %1082 = vadd.xlane.f32.xlu0 %v1081
    %v1083 = vpop.xlane.xlu0 %1082
    %v1084 = vsel %vm707, %v1040, 0.0
    %1085 = vadd.xlane.f32.xlu0 %v1084
    %v1086 = vpop.xlane.xlu0 %1085
    %v1087 = vsel %vm707, %v1042, 0.0
    %1088 = vadd.xlane.f32.xlu0 %v1087
    %v1089 = vpop.xlane.xlu0 %1088
    %v1090 = vsel %vm707, %v1044, 0.0
    %1091 = vadd.xlane.f32.xlu0 %v1090
    %v1092 = vpop.xlane.xlu0 %1091
    %v1093 = vrcp.pop %v1047
    %v1094 = vmul.f32 %v1014, %v1093
    %v1095 = vrcp.pop %v1050
    %v1096 = vmul.f32 %v1016, %v1095
    %v1097 = vrcp.pop %v1053
    %v1098 = vmul.f32 %v1018, %v1097
    %v1099 = vrcp.pop %v1056
    %v1100 = vmul.f32 %v1020, %v1099
    %v1101 = vrcp.pop %v1059
    %v1102 = vmul.f32 %v1022, %v1101
    %v1103 = vrcp.pop %v1062
    %v1104 = vmul.f32 %v1024, %v1103
    %v1105 = vrcp.pop %v1065
    %v1106 = vmul.f32 %v1026, %v1105
    %v1107 = vrcp.pop %v1068
    %v1108 = vmul.f32 %v1028, %v1107
    %v1109 = vrcp.pop %v1071
    %v1110 = vmul.f32 %v1030, %v1109
    %v1111 = vrcp.pop %v1074
    %v1112 = vmul.f32 %v1032, %v1111
    %v1113 = vrcp.pop %v1077
    %v1114 = vmul.f32 %v1034, %v1113
    %v1115 = vrcp.pop %v1080
    %v1116 = vmul.f32 %v1036, %v1115
    %v1117 = vrcp.pop %v1083
    %v1118 = vmul.f32 %v1038, %v1117
    %v1119 = vrcp.pop %v1086
    %v1120 = vmul.f32 %v1040, %v1119
    %v1121 = vrcp.pop %v1089
    %v1122 = vmul.f32 %v1042, %v1121
    %v1123 = vrcp.pop %v1092
    %v1124 = vmul.f32 %v1044, %v1123
    %v1125 = vpack.c.bf16 %v1096, %v1094
    %v1126 = vpack.c.bf16 %v1100, %v1098
    %v1127 = vpack.c.bf16 %v1104, %v1102
    %v1128 = vpack.c.bf16 %v1108, %v1106
    %v1129 = vpack.c.bf16 %v1112, %v1110
    %v1130 = vpack.c.bf16 %v1116, %v1114
    %v1131 = vpack.c.bf16 %v1120, %v1118
    %v1132 = vpack.c.bf16 %v1124, %v1122
    %v1133 = vpack.c.bf16 %v615, %v611
    %v1134 = vpack.c.bf16 %v625, %v621
    %v1135 = vpack.c.bf16 %v635, %v631
    %v1136 = vpack.c.bf16 %v645, %v641
    %v1137 = vpack.c.bf16 %v655, %v651
    %v1138 = vpack.c.bf16 %v665, %v661
    %v1139 = vpack.c.bf16 %v675, %v671
    %v1140 = vpack.c.bf16 %v685, %v681
    %v1142 = vsel %vm707, %v1125, 0
    %v1145 = vsel %vm707, %v1126, 0
    %v1148 = vsel %vm707, %v1127, 0
    %v1151 = vsel %vm707, %v1128, 0
    %1153 = vmatprep.subr.bf16.mxu0 0
    %1154 = vmatpush1.bf16.msra.mxu0 0
    %1155 = vmatprep.subr.bf16.mxu0 0
    %1156 = vmatpush1.bf16.msra.mxu0 0
    %1157 = vmatprep.subr.bf16.mxu0 0
    %1158 = vmatpush1.bf16.msra.mxu0 0
    %1159 = vmatprep.subr.bf16.mxu0 0
    %1160 = vmatpush1.bf16.msra.mxu0 0
    %1161 = vmatprep.subr.bf16.mxu0 0
    %1162 = vmatpush1.bf16.msra.mxu0 %v1136
    %1163 = vmatprep.subr.bf16.mxu0 0
    %1164 = vmatpush1.bf16.msra.mxu0 %v1135
    %1165 = vmatprep.subr.bf16.mxu0 0
    %1166 = vmatpush1.bf16.msra.mxu0 %v1134
    %1167 = vmatprep.subr.bf16.mxu0 0
    %1168 = vmatpush1.bf16.msra.mxu0 %v1133
    %1169 = vmatprep.subr.bf16.mxu0 0
    %1170 = vmatpush2.bf16.msra.mxu0 0
    %1171 = vmatprep.subr.bf16.mxu0 0
    %1172 = vmatpush2.bf16.msra.mxu0 0
    %1173 = vmatprep.subr.bf16.mxu0 0
    %1174 = vmatpush2.bf16.msra.mxu0 0
    %1175 = vmatprep.subr.bf16.mxu0 0
    %1176 = vmatpush2.bf16.msra.mxu0 0
    %1177 = vmatprep.subr.bf16.mxu0 0
    %1178 = vmatpush2.bf16.msra.mxu0 0
    %1179 = vmatprep.subr.bf16.mxu0 0
    %1180 = vmatpush2.bf16.msra.mxu0 0
    %1181 = vmatprep.subr.bf16.mxu0 0
    %1182 = vmatpush2.bf16.msra.mxu0 0
    %1183 = vmatprep.subr.bf16.mxu0 0
    %1184 = vmatpush2.bf16.msra.mxu0 0
    %1185 = vmatprep.mubr.bf16.mxu0 0
    %1186 = vmatmul.mubr.bf16.gmra.mxu0 %v1142
    %v1187 = vpop.f32.mrf.mxu0
    %v1188 = vadd.f32 0.0, %v1187
    %v1189 = vpop.f32.mrf.mxu0
    %v1190 = vpop.f32.mrf.mxu0
    %v1191 = vadd.f32 0.0, %v1190
    %v1192 = vpop.f32.mrf.mxu0
    %1193 = vmatprep.mubr.bf16.mxu0 0
    %1194 = vmatmul.mubr.bf16.gmra.mxu0 %v1145
    %v1195 = vpop.f32.mrf.mxu0
    %v1196 = vadd.f32 0.0, %v1195
    %v1197 = vpop.f32.mrf.mxu0
    %v1198 = vpop.f32.mrf.mxu0
    %v1199 = vadd.f32 0.0, %v1198
    %v1200 = vpop.f32.mrf.mxu0
    %1201 = vmatprep.mubr.bf16.mxu0 0
    %1202 = vmatmul.mubr.bf16.gmra.mxu0 %v1148
    %v1203 = vpop.f32.mrf.mxu0
    %v1204 = vadd.f32 0.0, %v1203
    %v1205 = vpop.f32.mrf.mxu0
    %v1206 = vpop.f32.mrf.mxu0
    %v1207 = vadd.f32 0.0, %v1206
    %v1208 = vpop.f32.mrf.mxu0
    %1209 = vmatprep.mubr.bf16.mxu0 0
    %1210 = vmatmul.mubr.bf16.gmra.mxu0 %v1151
    %v1211 = vpop.f32.mrf.mxu0
    %v1212 = vadd.f32 0.0, %v1211
    %v1213 = vpop.f32.mrf.mxu0
    %v1214 = vpop.f32.mrf.mxu0
    %v1215 = vadd.f32 0.0, %v1214
    %v1216 = vpop.f32.mrf.mxu0
    %1217 = vdwg.mxu0
    %v1219 = vsel %vm707, %v1129, 0
    %v1222 = vsel %vm707, %v1130, 0
    %v1225 = vsel %vm707, %v1131, 0
    %v1228 = vsel %vm707, %v1132, 0
    %1230 = vmatprep.subr.bf16.mxu0 0
    %1231 = vmatpush1.bf16.msra.mxu0 0
    %1232 = vmatprep.subr.bf16.mxu0 0
    %1233 = vmatpush1.bf16.msra.mxu0 0
    %1234 = vmatprep.subr.bf16.mxu0 0
    %1235 = vmatpush1.bf16.msra.mxu0 0
    %1236 = vmatprep.subr.bf16.mxu0 0
    %1237 = vmatpush1.bf16.msra.mxu0 0
    %1238 = vmatprep.subr.bf16.mxu0 0
    %1239 = vmatpush1.bf16.msra.mxu0 %v1140
    %1240 = vmatprep.subr.bf16.mxu0 0
    %1241 = vmatpush1.bf16.msra.mxu0 %v1139
    %1242 = vmatprep.subr.bf16.mxu0 0
    %1243 = vmatpush1.bf16.msra.mxu0 %v1138
    %1244 = vmatprep.subr.bf16.mxu0 0
    %1245 = vmatpush1.bf16.msra.mxu0 %v1137
    %1246 = vmatprep.subr.bf16.mxu0 0
    %1247 = vmatpush2.bf16.msra.mxu0 0
    %1248 = vmatprep.subr.bf16.mxu0 0
    %1249 = vmatpush2.bf16.msra.mxu0 0
    %1250 = vmatprep.subr.bf16.mxu0 0
    %1251 = vmatpush2.bf16.msra.mxu0 0
    %1252 = vmatprep.subr.bf16.mxu0 0
    %1253 = vmatpush2.bf16.msra.mxu0 0
    %1254 = vmatprep.subr.bf16.mxu0 0
    %1255 = vmatpush2.bf16.msra.mxu0 0
    %1256 = vmatprep.subr.bf16.mxu0 0
    %1257 = vmatpush2.bf16.msra.mxu0 0
    %1258 = vmatprep.subr.bf16.mxu0 0
    %1259 = vmatpush2.bf16.msra.mxu0 0
    %1260 = vmatprep.subr.bf16.mxu0 0
    %1261 = vmatpush2.bf16.msra.mxu0 0
    %1262 = vmatprep.mubr.bf16.mxu0 0
    %1263 = vmatmul.mubr.bf16.gmra.mxu0 %v1219
    %v1264 = vpop.f32.mrf.mxu0
    %v1265 = vadd.f32 0.0, %v1264
    %v1266 = vpop.f32.mrf.mxu0
    %v1267 = vpop.f32.mrf.mxu0
    %v1268 = vadd.f32 0.0, %v1267
    %v1269 = vpop.f32.mrf.mxu0
    %1270 = vmatprep.mubr.bf16.mxu0 0
    %1271 = vmatmul.mubr.bf16.gmra.mxu0 %v1222
    %v1272 = vpop.f32.mrf.mxu0
    %v1273 = vadd.f32 0.0, %v1272
    %v1274 = vpop.f32.mrf.mxu0
    %v1275 = vpop.f32.mrf.mxu0
    %v1276 = vadd.f32 0.0, %v1275
    %v1277 = vpop.f32.mrf.mxu0
    %1278 = vmatprep.mubr.bf16.mxu0 0
    %1279 = vmatmul.mubr.bf16.gmra.mxu0 %v1225
    %v1280 = vpop.f32.mrf.mxu0
    %v1281 = vadd.f32 0.0, %v1280
    %v1282 = vpop.f32.mrf.mxu0
    %v1283 = vpop.f32.mrf.mxu0
    %v1284 = vadd.f32 0.0, %v1283
    %v1285 = vpop.f32.mrf.mxu0
    %1286 = vmatprep.mubr.bf16.mxu0 0
    %1287 = vmatmul.mubr.bf16.gmra.mxu0 %v1228
    %v1288 = vpop.f32.mrf.mxu0
    %v1289 = vadd.f32 0.0, %v1288
    %v1290 = vpop.f32.mrf.mxu0
    %v1291 = vpop.f32.mrf.mxu0
    %v1292 = vadd.f32 0.0, %v1291
    %v1293 = vpop.f32.mrf.mxu0
    %1294 = vdwg.mxu0
    %1295 = vst.msk [vmem:[#allocation2] sm:$0xff] %vm707, %v1188
    %1296 = vst.msk [vmem:[#allocation2 + $0x8] sm:$0xff] %vm707, %v1191
    %1297 = vst.msk [vmem:[#allocation2 + $0x10] sm:$0xff] %vm707, %v1196
    %1298 = vst.msk [vmem:[#allocation2 + $0x18] sm:$0xff] %vm707, %v1199
    %1299 = vst.msk [vmem:[#allocation2 + $0x20] sm:$0xff] %vm707, %v1204
    %1300 = vst.msk [vmem:[#allocation2 + $0x28] sm:$0xff] %vm707, %v1207
    %1301 = vst.msk [vmem:[#allocation2 + $0x30] sm:$0xff] %vm707, %v1212
    %1302 = vst.msk [vmem:[#allocation2 + $0x38] sm:$0xff] %vm707, %v1215
    %1303 = vst.msk [vmem:[#allocation2 + $0x40] sm:$0xff] %vm707, %v1265
    %1304 = vst.msk [vmem:[#allocation2 + $0x48] sm:$0xff] %vm707, %v1268
    %1305 = vst.msk [vmem:[#allocation2 + $0x50] sm:$0xff] %vm707, %v1273
    %1306 = vst.msk [vmem:[#allocation2 + $0x58] sm:$0xff] %vm707, %v1276
    %1307 = vst.msk [vmem:[#allocation2 + $0x60] sm:$0xff] %vm707, %v1281
    %1308 = vst.msk [vmem:[#allocation2 + $0x68] sm:$0xff] %vm707, %v1284
    %1309 = vst.msk [vmem:[#allocation2 + $0x70] sm:$0xff] %vm707, %v1289
    %1310 = vst.msk [vmem:[#allocation2 + $0x78] sm:$0xff] %vm707, %v1292
    // Predicated region
    $region10: #{tpu_custom_call.1} parent=1 // pred_check
      _
    $region11: #{tpu_custom_call.1} parent=1 // pred_check_branch
      %1312 = sbr.rel (0) target = $region13
    $region12: #{tpu_custom_call.1} parent=1 // pred_region
      %s1314 = ssub.s32 2048, 2048
      %1315 = vsyncadd [#allocation3], %s1314
      %s1316 = sshll.u32 [#allocation2], 4
      %s1317 = int_to_ptr.vmem [resolvable:$true] %s1316
      %1322 = dma.vmem_to_hbm [thread:$0]  %s1317, 2048, %s2, [#allocation3], 128, 128, 8
    $region13: #{tpu_custom_call.1} parent=1 // pred_fallthru
      _
    // Predicated region
    $region14: #{tpu_custom_call.1} parent=1 // pred_check
      _
    $region15: #{tpu_custom_call.1} parent=1 // pred_check_branch
      %1324 = sbr.rel (0) target = $region17
    $region16: #{tpu_custom_call.1} parent=1 // pred_region
      %1325 = dma.done [#allocation3], 2048
    $region17: #{tpu_custom_call.1} parent=1 // pred_fallthru
      _
    %1326 = vsyncpa [#allocation3], 1

</llo_original>
